<compile_context>
chip_gen: v7x
topology: tpu7x:2x2x1
jax: 0.10.0
libtpu: 0.0.40
codegen_flags: <defaults>
</compile_context>

<pallas_src>
import functools

import jax
import jax.numpy as jnp
from jax.experimental import pallas as pl
from jax.experimental.pallas import tpu as pltpu

_LANES = 128


def _ce_kernel(ignore_index, x_ref, labels_ref, loss_ref, count_ref):
    # x_ref:      (C, tr, 128)  logits block (classes leading)
    # labels_ref: (tr, 128)     int32 labels block (lane dense)
    # loss_ref / count_ref: (tr, 128) f32 partial accumulators, resident across
    #                       the reduction (last) grid axis.
    ri = pl.program_id(2)

    @pl.when(ri == 0)
    def _():
        loss_ref[...] = jnp.zeros_like(loss_ref)
        count_ref[...] = jnp.zeros_like(count_ref)

    x = x_ref[...].astype(jnp.float32)          # (C, tr, 128)
    labels = labels_ref[...]                    # (tr, 128) int32

    # Class-axis (leading) reductions: plain cross-vreg VPU max/add, no XLU.
    m = jnp.max(x, axis=0)                                       # (tr, 128)
    lse = jnp.log(jnp.sum(jnp.exp(x - m[None]), axis=0))         # (tr, 128)

    # Fused target gather: pick x[label] via select+sum over the class axis.
    cls = jax.lax.broadcasted_iota(jnp.int32, x.shape, 0)        # (C, tr, 128)
    picked = jnp.sum(jnp.where(cls == labels[None], x, 0.0), axis=0)

    valid = labels != ignore_index                               # (tr, 128)
    nll = (m + lse) - picked                                     # -log p[label]

    loss_ref[...] += jnp.where(valid, nll, 0.0)
    count_ref[...] += valid.astype(jnp.float32)


def _pick_row_tile(r, c, itemsize, target_bytes=2 << 20, max_rows=1024):
    """Row-block size: big enough that the logits block is ~target_bytes
    (bandwidth-bound, not grid-overhead-bound), capped so the VMEM-resident
    accumulators stay small; always 8-aligned unless it covers the whole
    (possibly <8-row) array, which is also a legal block."""
    budget = max(8, target_bytes // (c * _LANES * itemsize))
    budget = min(budget, max_rows)
    budget = max(8, (budget // 8) * 8)
    if r <= budget:
        return r              # single block == full row axis (always legal)
    return budget             # caller pads rows to a multiple of this


def cross_entropy_loss(logits, labels, *, reduction="mean", ignore_index=-1):
    """logits: (b, C, h, w) float; labels: (b, h, w) [or (b,1,h,w)] int.

    Returns the scalar cross-entropy loss (reduction 'mean' or 'sum')."""
    b, c, h, w = logits.shape
    if labels.ndim == 4 and labels.shape[1] == 1:   # mirror torch .squeeze(1)
        labels = labels[:, 0]
    labels = labels.astype(jnp.int32)

    p = h * w
    r = (p + _LANES - 1) // _LANES                  # sublane rows needed

    itemsize = jnp.dtype(logits.dtype).itemsize
    tr = _pick_row_tile(r, c, itemsize)
    r_pad = ((r + tr - 1) // tr) * tr               # rows divide evenly by tr
    p_pad = r_pad * _LANES

    # Contiguous reshapes only -- no transpose / HBM relayout.  Upstream bf16
    # logits stay bf16 over the wire; the kernel upcasts to f32 per block.
    x = logits.reshape(b, c, p)
    y = labels.reshape(b, p)
    if p_pad != p:
        # Padded pixels get label == ignore_index -> zero contribution.
        x = jnp.pad(x, ((0, 0), (0, 0), (0, p_pad - p)))
        y = jnp.pad(y, ((0, 0), (0, p_pad - p)), constant_values=ignore_index)

    x = x.reshape(b, c, r_pad, _LANES)
    y = y.reshape(b, r_pad, _LANES)
    n_rblocks = r_pad // tr

    # v7x megacore: batch axis is "parallel"; if b == 1, also split the pixel
    # row-blocks into 2 parallel chunks, each with its own accumulator row.
    nc = 2 if (b == 1 and n_rblocks >= 2 and n_rblocks % 2 == 0) else 1
    rb_per_chunk = n_rblocks // nc

    kernel = functools.partial(_ce_kernel, ignore_index)

    loss_p, count_p = pl.pallas_call(
        kernel,
        out_shape=(
            jax.ShapeDtypeStruct((b, nc, tr, _LANES), jnp.float32),
            jax.ShapeDtypeStruct((b, nc, tr, _LANES), jnp.float32),
        ),
        grid_spec=pltpu.PrefetchScalarGridSpec(
            num_scalar_prefetch=0,
            grid=(b, nc, rb_per_chunk),
            in_specs=[
                pl.BlockSpec(
                    (None, c, tr, _LANES),
                    lambda bi, ci, ri: (bi, 0, ci * rb_per_chunk + ri, 0)),
                pl.BlockSpec(
                    (None, tr, _LANES),
                    lambda bi, ci, ri: (bi, ci * rb_per_chunk + ri, 0)),
            ],
            out_specs=(
                pl.BlockSpec((None, None, tr, _LANES),
                             lambda bi, ci, ri: (bi, ci, 0, 0)),
                pl.BlockSpec((None, None, tr, _LANES),
                             lambda bi, ci, ri: (bi, ci, 0, 0)),
            ),
        ),
        compiler_params=pltpu.CompilerParams(
            dimension_semantics=("parallel", "parallel", "arbitrary"),
            vmem_limit_bytes=32 * 1024 * 1024,
        ),
    )(x, y)

    # Tiny final reduce in XLA (b*nc*tr*128 elems each).
    loss_sum = jnp.sum(loss_p)
    count = jnp.sum(count_p)

    if reduction == "mean":
        return loss_sum / count
    elif reduction == "sum":
        return loss_sum
    else:
        # TODO(synk): reduction='none' needs a per-pixel output map; only
        # 'mean' (the module default) and 'sum' are supported here.
        raise NotImplementedError(reduction)


def _reference(logits, labels, ignore_index=-1, reduction="mean"):
    b, c, h, w = logits.shape
    x = logits.astype(jnp.float32).reshape(b, c, h * w)
    y = labels.reshape(b, h * w).astype(jnp.int32)
    logp = jax.nn.log_softmax(x, axis=1)
    picked = jnp.take_along_axis(
        logp, jnp.clip(y, 0, c - 1)[:, None, :], axis=1)[:, 0, :]
    valid = (y != ignore_index).astype(jnp.float32)
    total = jnp.sum(-picked * valid)
    if reduction == "mean":
        return total / jnp.sum(valid)
    return total


if __name__ == "__main__":
    key = jax.random.PRNGKey(0)
    k1, k2, k3 = jax.random.split(key, 3)

    # Primary shape from the module: (b, num_classes, h, w) + (b, h, w) labels.
    b, c, h, w = 2, 4, 16, 16
    logits = jax.random.normal(k1, (b, c, h, w), dtype=jnp.float32)
    labels = jax.random.randint(k2, (b, h, w), 0, c, dtype=jnp.int32)
    # Sprinkle in some ignore_index pixels.
    ignore_mask = jax.random.bernoulli(k3, 0.1, (b, h, w))
    labels = jnp.where(ignore_mask, -1, labels)

    loss = cross_entropy_loss(logits, labels, reduction="mean", ignore_index=-1)
    loss = jax.block_until_ready(loss)
    ref = _reference(logits, labels, ignore_index=-1, reduction="mean")
    assert jnp.allclose(loss, ref, rtol=1e-5, atol=1e-5), (loss, ref)

    # Non-128-multiple spatial size exercises the ignore-padded tail path.
    k4, k5 = jax.random.split(k3)
    h2, w2 = 17, 17
    logits2 = jax.random.normal(k4, (b, c, h2, w2), dtype=jnp.float32)
    labels2 = jax.random.randint(k5, (b, h2, w2), 0, c, dtype=jnp.int32)
    loss2 = cross_entropy_loss(logits2, labels2, reduction="sum",
                               ignore_index=-1)
    loss2 = jax.block_until_ready(loss2)
    ref2 = _reference(logits2, labels2, ignore_index=-1, reduction="sum")
    assert jnp.allclose(loss2, ref2, rtol=1e-5, atol=1e-4), (loss2, ref2)

    print("KERNEL_OK")
</pallas_src>

<mosaic_0001>
module attributes {stable_mosaic.version = 11 : i64} {
  func.func @_ce_kernel(%arg0: i32, %arg1: i32, %arg2: i32, %arg3: memref<1x4x2x128xf32, #tpu.memory_space<vmem>>, %arg4: memref<1x2x128xi32, #tpu.memory_space<vmem>>, %arg5: memref<1x1x2x128xf32, #tpu.memory_space<vmem>>, %arg6: memref<1x1x2x128xf32, #tpu.memory_space<vmem>>) attributes {dimension_semantics = [#tpu.dimension_semantics<parallel>, #tpu.dimension_semantics<parallel>, #tpu.dimension_semantics<arbitrary>], iteration_bounds = array<i64: 2, 1, 1>, scalar_prefetch = 0 : i64, scratch_operands = 0 : i64, tpu.core_type = #tpu.core_type<tc>, window_params = [{transform_indices = @transform_0, window_bounds = array<i64: 1, 4, 2, 128>}, {transform_indices = @transform_1, window_bounds = array<i64: 1, 2, 128>}, {transform_indices = @transform_2, window_bounds = array<i64: 1, 1, 2, 128>}, {transform_indices = @transform_3, window_bounds = array<i64: 1, 1, 2, 128>}]} {
    %c0_i32 = arith.constant 0 : i32
    %0 = arith.cmpi eq, %arg2, %c0_i32 : i32
    %1 = arith.extui %0 : i1 to i32
    %c0_i32_0 = arith.constant 0 : i32
    %2 = arith.cmpi ne, %1, %c0_i32_0 : i32
    scf.if %2 {
      %cst_27 = arith.constant 0.000000e+00 : f32
      %41 = vector.broadcast %cst_27 : f32 to vector<2x128xf32>
      %c0_28 = arith.constant 0 : index
      %c0_29 = arith.constant 0 : index
      %c0_30 = arith.constant 0 : index
      %c0_31 = arith.constant 0 : index
      %42 = vector.load %arg5[%c0_28, %c0_29, %c0_30, %c0_31] : memref<1x1x2x128xf32, #tpu.memory_space<vmem>>, vector<1x1x2x128xf32>
      %43 = vector.shape_cast %42 : vector<1x1x2x128xf32> to vector<2x128xf32>
      %44 = vector.shape_cast %41 : vector<2x128xf32> to vector<1x1x2x128xf32>
      tpu.vector_store %arg5[%c0_28, %c0_29, %c0_30, %c0_31], %44 {strides = array<i32>} : memref<1x1x2x128xf32, #tpu.memory_space<vmem>>, vector<1x1x2x128xf32>,
      %cst_32 = arith.constant 0.000000e+00 : f32
      %45 = vector.broadcast %cst_32 : f32 to vector<2x128xf32>
      %c0_33 = arith.constant 0 : index
      %c0_34 = arith.constant 0 : index
      %c0_35 = arith.constant 0 : index
      %c0_36 = arith.constant 0 : index
      %46 = vector.load %arg6[%c0_33, %c0_34, %c0_35, %c0_36] : memref<1x1x2x128xf32, #tpu.memory_space<vmem>>, vector<1x1x2x128xf32>
      %47 = vector.shape_cast %46 : vector<1x1x2x128xf32> to vector<2x128xf32>
      %48 = vector.shape_cast %45 : vector<2x128xf32> to vector<1x1x2x128xf32>
      tpu.vector_store %arg6[%c0_33, %c0_34, %c0_35, %c0_36], %48 {strides = array<i32>} : memref<1x1x2x128xf32, #tpu.memory_space<vmem>>, vector<1x1x2x128xf32>,
    } else {
    }
    %c0 = arith.constant 0 : index
    %c0_1 = arith.constant 0 : index
    %c0_2 = arith.constant 0 : index
    %c0_3 = arith.constant 0 : index
    %3 = vector.load %arg3[%c0, %c0_1, %c0_2, %c0_3] : memref<1x4x2x128xf32, #tpu.memory_space<vmem>>, vector<1x4x2x128xf32>
    %4 = vector.shape_cast %3 : vector<1x4x2x128xf32> to vector<4x2x128xf32>
    %c0_4 = arith.constant 0 : index
    %c0_5 = arith.constant 0 : index
    %c0_6 = arith.constant 0 : index
    %5 = vector.load %arg4[%c0_4, %c0_5, %c0_6] : memref<1x2x128xi32, #tpu.memory_space<vmem>>, vector<1x2x128xi32>
    %6 = vector.shape_cast %5 : vector<1x2x128xi32> to vector<2x128xi32>
    %cst = arith.constant dense<0xFF800000> : vector<2x128xf32>
    %7 = vector.multi_reduction <maximumf>, %4, %cst [0] : vector<4x2x128xf32> to vector<2x128xf32>
    %8 = vector.shape_cast %7 : vector<2x128xf32> to vector<1x2x128xf32>
    %9 = vector.broadcast %8 : vector<1x2x128xf32> to vector<4x2x128xf32>
    %10 = arith.subf %4, %9 : vector<4x2x128xf32>
    %11 = math.exp %10 : vector<4x2x128xf32>
    %cst_7 = arith.constant dense<0.000000e+00> : vector<2x128xf32>
    %12 = vector.multi_reduction <add>, %11, %cst_7 [0] : vector<4x2x128xf32> to vector<2x128xf32>
    %13 = math.log %12 : vector<2x128xf32>
    %14 = tpu.iota {dimensions = array<i32: 0>} : vector<4x2x128xi32>
    %15 = vector.shape_cast %6 : vector<2x128xi32> to vector<1x2x128xi32>
    %16 = vector.broadcast %15 : vector<1x2x128xi32> to vector<4x2x128xi32>
    %17 = arith.cmpi eq, %14, %16 : vector<4x2x128xi32>
    %cst_8 = arith.constant 0.000000e+00 : f32
    %18 = vector.broadcast %cst_8 : f32 to vector<4x2x128xf32>
    %19 = arith.select %17, %4, %18 : vector<4x2x128xi1>, vector<4x2x128xf32>
    %cst_9 = arith.constant dense<0.000000e+00> : vector<2x128xf32>
    %20 = vector.multi_reduction <add>, %19, %cst_9 [0] : vector<4x2x128xf32> to vector<2x128xf32>
    %c-1_i32 = arith.constant -1 : i32
    %21 = vector.broadcast %c-1_i32 : i32 to vector<2x128xi32>
    %22 = arith.cmpi ne, %6, %21 : vector<2x128xi32>
    %23 = arith.addf %7, %13 : vector<2x128xf32>
    %24 = arith.subf %23, %20 : vector<2x128xf32>
    %c0_10 = arith.constant 0 : index
    %c0_11 = arith.constant 0 : index
    %c0_12 = arith.constant 0 : index
    %c0_13 = arith.constant 0 : index
    %25 = vector.load %arg5[%c0_10, %c0_11, %c0_12, %c0_13] : memref<1x1x2x128xf32, #tpu.memory_space<vmem>>, vector<1x1x2x128xf32>
    %26 = vector.shape_cast %25 : vector<1x1x2x128xf32> to vector<2x128xf32>
    %cst_14 = arith.constant 0.000000e+00 : f32
    %27 = vector.broadcast %cst_14 : f32 to vector<2x128xf32>
    %28 = arith.select %22, %24, %27 : vector<2x128xi1>, vector<2x128xf32>
    %29 = arith.addf %26, %28 : vector<2x128xf32>
    %c0_15 = arith.constant 0 : index
    %c0_16 = arith.constant 0 : index
    %c0_17 = arith.constant 0 : index
    %c0_18 = arith.constant 0 : index
    %30 = vector.load %arg5[%c0_15, %c0_16, %c0_17, %c0_18] : memref<1x1x2x128xf32, #tpu.memory_space<vmem>>, vector<1x1x2x128xf32>
    %31 = vector.shape_cast %30 : vector<1x1x2x128xf32> to vector<2x128xf32>
    %32 = vector.shape_cast %29 : vector<2x128xf32> to vector<1x1x2x128xf32>
    tpu.vector_store %arg5[%c0_15, %c0_16, %c0_17, %c0_18], %32 {strides = array<i32>} : memref<1x1x2x128xf32, #tpu.memory_space<vmem>>, vector<1x1x2x128xf32>,
    %c0_19 = arith.constant 0 : index
    %c0_20 = arith.constant 0 : index
    %c0_21 = arith.constant 0 : index
    %c0_22 = arith.constant 0 : index
    %33 = vector.load %arg6[%c0_19, %c0_20, %c0_21, %c0_22] : memref<1x1x2x128xf32, #tpu.memory_space<vmem>>, vector<1x1x2x128xf32>
    %34 = vector.shape_cast %33 : vector<1x1x2x128xf32> to vector<2x128xf32>
    %35 = arith.extui %22 : vector<2x128xi1> to vector<2x128xi32>
    %36 = arith.sitofp %35 : vector<2x128xi32> to vector<2x128xf32>
    %37 = arith.addf %34, %36 : vector<2x128xf32>
    %c0_23 = arith.constant 0 : index
    %c0_24 = arith.constant 0 : index
    %c0_25 = arith.constant 0 : index
    %c0_26 = arith.constant 0 : index
    %38 = vector.load %arg6[%c0_23, %c0_24, %c0_25, %c0_26] : memref<1x1x2x128xf32, #tpu.memory_space<vmem>>, vector<1x1x2x128xf32>
    %39 = vector.shape_cast %38 : vector<1x1x2x128xf32> to vector<2x128xf32>
    %40 = vector.shape_cast %37 : vector<2x128xf32> to vector<1x1x2x128xf32>
    tpu.vector_store %arg6[%c0_23, %c0_24, %c0_25, %c0_26], %40 {strides = array<i32>} : memref<1x1x2x128xf32, #tpu.memory_space<vmem>>, vector<1x1x2x128xf32>,
    return
  }
  func.func @transform_0(%arg0: i32, %arg1: i32, %arg2: i32) -> (i32, i32, i32, i32) {
    %c1_i32 = arith.constant 1 : i32
    %0 = arith.muli %arg1, %c1_i32 : i32
    %1 = arith.addi %0, %arg2 : i32
    %c0_i32 = arith.constant 0 : i32
    %c0_i32_0 = arith.constant 0 : i32
    %c0_i32_1 = arith.constant 0 : i32
    return %arg0, %c0_i32, %1, %c0_i32_0 : i32, i32, i32, i32
  }
  func.func @transform_1(%arg0: i32, %arg1: i32, %arg2: i32) -> (i32, i32, i32) {
    %c1_i32 = arith.constant 1 : i32
    %0 = arith.muli %arg1, %c1_i32 : i32
    %1 = arith.addi %0, %arg2 : i32
    %c0_i32 = arith.constant 0 : i32
    %c0_i32_0 = arith.constant 0 : i32
    return %arg0, %1, %c0_i32 : i32, i32, i32
  }
  func.func @transform_2(%arg0: i32, %arg1: i32, %arg2: i32) -> (i32, i32, i32, i32) {
    %c0_i32 = arith.constant 0 : i32
    %c0_i32_0 = arith.constant 0 : i32
    %c0_i32_1 = arith.constant 0 : i32
    return %arg0, %arg1, %c0_i32, %c0_i32_0 : i32, i32, i32, i32
  }
  func.func @transform_3(%arg0: i32, %arg1: i32, %arg2: i32) -> (i32, i32, i32, i32) {
    %c0_i32 = arith.constant 0 : i32
    %c0_i32_0 = arith.constant 0 : i32
    %c0_i32_1 = arith.constant 0 : i32
    return %arg0, %arg1, %c0_i32, %c0_i32_0 : i32, i32, i32, i32
  }
}

</mosaic_0001>

<llo_original>
// kernel: tpu_custom_call.1
$region0: #{tpu_custom_call.1}
  #allocation0 [shape = 'u32[]', space=smem, size = 0x4, offset = 0x4, fixed_abs, tag = 'smem constant byte address 0x4 - core index']
  #allocation1 [shape = 'u32[144,128]{1,0:T(1,128)}', space=vmem, size = 0x12000, scoped, tag = 'internal scratch']
  %s0 = inlined_call_operand.hbm [shape: f32[2,4,2,128], index: 0, kind: input, shape index: {}]
  %s1 = inlined_call_operand.hbm [shape: s32[2,2,128], index: 1, kind: input, shape index: {}]
  %s2 = inlined_call_operand.hbm [shape: f32[2,1,2,128], index: 2, kind: output, shape index: {0}]
  %s3 = inlined_call_operand.hbm [shape: f32[2,1,2,128], index: 3, kind: output, shape index: {1}]
  %4 = xla_tuple %s2, %s3
  %s5 = sld [smem:[#allocation0]]
  $region61: #{tpu_custom_call.1} parent=0
    _
  %s7 = ssub.s32 1, %s5
  %s8 = scalar_select 0, %s7, %s5
  $region1: #{tpu_custom_call.1} parent=0
    #allocation2 [shape = 'u8[8192]{0}', space=vmem, size = 0x2000, scoped, tag = 'input window, operand 0']
    #allocation3 [shape = 's32[2]{0}', space=sflag, size = 0x8, scoped, tag = 'scoped memory for tpu_custom_call.1']
    #allocation4 [shape = 's32[2]{0}', space=sflag, size = 0x8, scoped, tag = 'scoped memory for tpu_custom_call.1']
    #allocation5 [shape = 'u8[2048]{0}', space=vmem, size = 0x800, scoped, tag = 'input window, operand 1']
    #allocation6 [shape = 's32[2]{0}', space=sflag, size = 0x8, scoped, tag = 'scoped memory for tpu_custom_call.1']
    #allocation7 [shape = 'u8[2048]{0}', space=vmem, size = 0x800, scoped, tag = 'output window, operand 0']
    #allocation8 [shape = 'u8[2048]{0}', space=vmem, size = 0x800, scoped, tag = 'output window, operand 1']
    #allocation9 [shape = 's32[2]{0}', space=sflag, size = 0x8, scoped, tag = 'scoped memory for tpu_custom_call.1']
    %9 = vsyncpa [#allocation3], 0
    %s10 = scalar_lea.sflag [#allocation3], 1
    %11 = vsyncpa %s10, 0
    %12 = vsyncpa [#allocation6], 0
    %s13 = scalar_lea.sflag [#allocation6], 1
    %14 = vsyncpa %s13, 0
    %15 = vsyncpa [#allocation4], 0
    %s16 = scalar_lea.sflag [#allocation4], 1
    %17 = vsyncpa %s16, 0
    %18 = vsyncpa [#allocation9], 0
    %s19 = scalar_lea.sflag [#allocation9], 1
    %20 = vsyncpa %s19, 0
    loop: start=0, step=1, limit=4
    $region2: #{tpu_custom_call.1} parent=1 // loop_pre_header
      _
    $region3: #{tpu_custom_call.1} parent=1 // loop_header
      %s22 = sphi 0, %s26
      %p23 = scmp.ge.s32.totalorder %s22, 4
      %s29 = sphi 0, %s48
      %s30 = sphi 0, %s44
      %s31 = sphi 0, %s40
      %s32 = sphi 0, %s29
      %s33 = sphi 0, %s30
      %s34 = sphi 0, %s31
      %s35 = sphi 0, %s32
      %s36 = sphi 0, %s33
      %s37 = sphi 0, %s34
      %s55 = sphi 0, %s57
      %s58 = sphi 0, %s55
      %s59 = sphi 0, %s58
      %s75 = sphi 0, %s59
      %s85 = sphi 0, %s87
      %s88 = sphi 0, %s85
      %s89 = sphi 0, %s88
      %s105 = sphi 0, %s89
      %s113 = sphi 0, %s115
      %s116 = sphi 0, %s113
      %s117 = sphi 0, %s116
      %s133 = sphi 0, %s117
      %s141 = sphi 0, %s143
      %s144 = sphi 0, %s141
      %s145 = sphi 0, %s144
      %s161 = sphi 0, %s145
    $region4: #{tpu_custom_call.1} parent=1 // loop_header_branch
      %25 = sbr.rel (%p23) target = $region8
    $region5: #{tpu_custom_call.1} parent=1 // loop_body
      %s27 = ssub.s32 %s22, 1
      %s28 = ssub.s32 %s22, 2
      %s38 = sadd.s32 1, %s31
      %p39 = scmp.ge.s32.totalorder %s38, 1
      %s40 = scalar_select %p39, 0, %s38
      %s41 = sadd.s32 1, %s30
      %s42 = scalar_select %p39, %s41, %s30
      %p43 = scmp.ge.s32.totalorder %s42, 1
      %s44 = scalar_select %p43, 0, %s42
      %s45 = sadd.s32 1, %s29
      %s46 = scalar_select %p43, %s45, %s29
      %p47 = scmp.ge.s32.totalorder %s46, 2
      %s48 = scalar_select %p47, 0, %s46
      %s49 = sadd.s32 %s30, %s31
      %s50 = sadd.s32 %s44, %s40
      %s51 = ssub.s32 %s29, %s48
      %s52 = ssub.s32 %s49, %s50
      %s53 = sor.u32 %s51, %s52
      %p54 = scmp.eq.s32.totalorder %s53, 0
      %s56 = sadd.s32 %s55, 1
      %s57 = scalar_select %p54, %s55, %s56
      %p60 = pneg %p54
      %p61 = scmp.eq.s32.totalorder %s22, 1
      %p62 = por %p60, %p61
      %p63 = scmp.ne.s32.totalorder %s55, %s58
      %p64 = scmp.eq.s32.totalorder %s22, 0
      %p65 = por %p63, %p64
      %p66 = scmp.ne.s32.totalorder %s55, %s58
      %p67 = scmp.eq.s32.totalorder %s27, 1
      %p68 = por %p66, %p67
      %p69 = scmp.ne.s32.totalorder %s58, %s59
      %p70 = scmp.eq.s32.totalorder %s27, 0
      %p71 = por %p69, %p70
      %p72 = scmp.ne.s32.totalorder %s58, %s59
      %p73 = scmp.eq.s32.totalorder %s28, 1
      %p74 = por %p72, %p73
      %p76 = scmp.ne.s32.totalorder %s59, %s75
      %p77 = scmp.eq.s32.totalorder %s28, 0
      %p78 = por %p76, %p77
      %s79 = sadd.s32 %s30, %s31
      %s80 = sadd.s32 %s44, %s40
      %s81 = ssub.s32 %s29, %s48
      %s82 = ssub.s32 %s79, %s80
      %s83 = sor.u32 %s81, %s82
      %p84 = scmp.eq.s32.totalorder %s83, 0
      %s86 = sadd.s32 %s85, 1
      %s87 = scalar_select %p84, %s85, %s86
      %p90 = pneg %p84
      %p91 = scmp.eq.s32.totalorder %s22, 1
      %p92 = por %p90, %p91
      %p93 = scmp.ne.s32.totalorder %s85, %s88
      %p94 = scmp.eq.s32.totalorder %s22, 0
      %p95 = por %p93, %p94
      %p96 = scmp.ne.s32.totalorder %s85, %s88
      %p97 = scmp.eq.s32.totalorder %s27, 1
      %p98 = por %p96, %p97
      %p99 = scmp.ne.s32.totalorder %s88, %s89
      %p100 = scmp.eq.s32.totalorder %s27, 0
      %p101 = por %p99, %p100
      %p102 = scmp.ne.s32.totalorder %s88, %s89
      %p103 = scmp.eq.s32.totalorder %s28, 1
      %p104 = por %p102, %p103
      %p106 = scmp.ne.s32.totalorder %s89, %s105
      %p107 = scmp.eq.s32.totalorder %s28, 0
      %p108 = por %p106, %p107
      %s109 = ssub.s32 %s29, %s48
      %s110 = ssub.s32 %s30, %s44
      %s111 = sor.u32 %s109, %s110
      %p112 = scmp.eq.s32.totalorder %s111, 0
      %s114 = sadd.s32 %s113, 1
      %s115 = scalar_select %p112, %s113, %s114
      %p118 = pneg %p112
      %p119 = scmp.eq.s32.totalorder %s22, 1
      %p120 = por %p118, %p119
      %p121 = scmp.ne.s32.totalorder %s113, %s116
      %p122 = scmp.eq.s32.totalorder %s22, 0
      %p123 = por %p121, %p122
      %p124 = scmp.ne.s32.totalorder %s113, %s116
      %p125 = scmp.eq.s32.totalorder %s27, 1
      %p126 = por %p124, %p125
      %p127 = scmp.ne.s32.totalorder %s116, %s117
      %p128 = scmp.eq.s32.totalorder %s27, 0
      %p129 = por %p127, %p128
      %p130 = scmp.ne.s32.totalorder %s116, %s117
      %p131 = scmp.eq.s32.totalorder %s28, 1
      %p132 = por %p130, %p131
      %p134 = scmp.ne.s32.totalorder %s117, %s133
      %p135 = scmp.eq.s32.totalorder %s28, 0
      %p136 = por %p134, %p135
      %s137 = ssub.s32 %s29, %s48
      %s138 = ssub.s32 %s30, %s44
      %s139 = sor.u32 %s137, %s138
      %p140 = scmp.eq.s32.totalorder %s139, 0
      %s142 = sadd.s32 %s141, 1
      %s143 = scalar_select %p140, %s141, %s142
      %p146 = pneg %p140
      %p147 = scmp.eq.s32.totalorder %s22, 1
      %p148 = por %p146, %p147
      %p149 = scmp.ne.s32.totalorder %s141, %s144
      %p150 = scmp.eq.s32.totalorder %s22, 0
      %p151 = por %p149, %p150
      %p152 = scmp.ne.s32.totalorder %s141, %s144
      %p153 = scmp.eq.s32.totalorder %s27, 1
      %p154 = por %p152, %p153
      %p155 = scmp.ne.s32.totalorder %s144, %s145
      %p156 = scmp.eq.s32.totalorder %s27, 0
      %p157 = por %p155, %p156
      %p158 = scmp.ne.s32.totalorder %s144, %s145
      %p159 = scmp.eq.s32.totalorder %s28, 1
      %p160 = por %p158, %p159
      %p162 = scmp.ne.s32.totalorder %s145, %s161
      %p163 = scmp.eq.s32.totalorder %s28, 0
      %p164 = por %p162, %p163
      %p165 = scmp.le.s32.totalorder 1, %s22
      %p166 = scmp.lt.s32.totalorder %s22, 3
      %p167 = pnand %p165, %p166
      %p168 = pneg %p167
      // Predicated region
      $region9: #{tpu_custom_call.1} parent=5 // pred_check
        _
      $region10: #{tpu_custom_call.1} parent=5 // pred_check_branch
        %170 = sbr.rel (%p167) target = $region12
      $region11: #{tpu_custom_call.1} parent=5 // pred_region
        %s171 = ssub.s32 %s22, 1
      $region12: #{tpu_custom_call.1} parent=5 // pred_fallthru
        _
      %p172 = scmp.lt.s32.totalorder %s22, 2
      // Predicated region
      $region13: #{tpu_custom_call.1} parent=5 // pred_check
        %p173 = pneg %p172
      $region14: #{tpu_custom_call.1} parent=5 // pred_check_branch
        %175 = sbr.rel (%p173) target = $region16
      $region15: #{tpu_custom_call.1} parent=5 // pred_region
        // Predicated region
        $region17: #{tpu_custom_call.1} parent=15 // pred_check
          %p176 = pneg %p65
        $region18: #{tpu_custom_call.1} parent=15 // pred_check_branch
          %178 = sbr.rel (%p176) target = $region20
        $region19: #{tpu_custom_call.1} parent=15 // pred_region
          %s179 = sand.u32 %s55, 1
          %s180 = scalar_lea.sflag [#allocation3], %s179
          %s181 = sand.u32 %s55, 1
          %s182 = smul.addr %s181, 8
          %s183 = scalar_lea.vmem [#allocation2], %s182
          %s184 = sadd.s32 %s30, %s31
          %s186 = ssub.s32 128, 128
          %187 = vsyncadd %s180, %s186
          %s188 = smul.addr %s29, 4
          %s189 = sadd.s32 %s184, %s188
          %s190 = smul.addr %s189, 32
          %s191 = scalar_lea.hbm %s0, %s190
          %s192 = sshll.u32 %s183, 4
          %s193 = int_to_ptr.vmem [resolvable:$true] %s192
          %198 = dma.hbm_to_vmem [thread:$0]  %s191, 128, %s193, %s180, 32, 32, 2
        $region20: #{tpu_custom_call.1} parent=15 // pred_fallthru
          _
        // Predicated region
        $region21: #{tpu_custom_call.1} parent=15 // pred_check
          %p199 = pneg %p95
        $region22: #{tpu_custom_call.1} parent=15 // pred_check_branch
          %201 = sbr.rel (%p199) target = $region24
        $region23: #{tpu_custom_call.1} parent=15 // pred_region
          %s202 = sand.u32 %s85, 1
          %s203 = scalar_lea.sflag [#allocation6], %s202
          %s204 = sand.u32 %s85, 1
          %s205 = smul.addr %s204, 2
          %s206 = scalar_lea.vmem [#allocation5], %s205
          %s207 = sadd.s32 %s30, %s31
          %s209 = ssub.s32 32, 32
          %210 = vsyncadd %s203, %s209
          %s211 = sadd.s32 %s207, %s29
          %s212 = smul.addr %s211, 32
          %s213 = scalar_lea.hbm %s1, %s212
          %s215 = sshll.u32 %s206, 4
          %s216 = int_to_ptr.vmem [resolvable:$true] %s215
          %218 = dma.hbm_to_vmem [thread:$0]  %s213, 32, %s216, %s203
        $region24: #{tpu_custom_call.1} parent=15 // pred_fallthru
          _
      $region16: #{tpu_custom_call.1} parent=5 // pred_fallthru
        _
      %p219 = scmp.le.s32.totalorder 1, %s22
      %p220 = scmp.lt.s32.totalorder %s22, 3
      %p221 = pnand %p219, %p220
      %p222 = pneg %p221
      // Predicated region
      $region25: #{tpu_custom_call.1} parent=5 // pred_check
        _
      $region26: #{tpu_custom_call.1} parent=5 // pred_check_branch
        %224 = sbr.rel (%p221) target = $region28
      $region27: #{tpu_custom_call.1} parent=5 // pred_region
        %s225 = ssub.s32 %s22, 1
        %s226 = sand.u32 %s58, 1
        %s227 = scalar_lea.sflag [#allocation3], %s226
        %s228 = sand.u32 %s58, 1
        %s229 = smul.addr %s228, 8
        %s230 = scalar_lea.vmem [#allocation2], %s229
        // Predicated region
        $region29: #{tpu_custom_call.1} parent=27 // pred_check
          %p231 = pneg %p71
        $region30: #{tpu_custom_call.1} parent=27 // pred_check_branch
          %233 = sbr.rel (%p231) target = $region32
        $region31: #{tpu_custom_call.1} parent=27 // pred_region
          %234 = dma.done %s227, 128
        $region32: #{tpu_custom_call.1} parent=27 // pred_fallthru
          _
        %s235 = sand.u32 %s88, 1
        %s236 = scalar_lea.sflag [#allocation6], %s235
        %s237 = sand.u32 %s88, 1
        %s238 = smul.addr %s237, 2
        %s239 = scalar_lea.vmem [#allocation5], %s238
        // Predicated region
        $region33: #{tpu_custom_call.1} parent=27 // pred_check
          %p240 = pneg %p101
        $region34: #{tpu_custom_call.1} parent=27 // pred_check_branch
          %242 = sbr.rel (%p240) target = $region36
        $region35: #{tpu_custom_call.1} parent=27 // pred_region
          %243 = dma.done %s236, 32
        $region36: #{tpu_custom_call.1} parent=27 // pred_fallthru
          _
        %s244 = sand.u32 %s58, 1
        %s245 = scalar_lea.sflag [#allocation3], %s244
        %s246 = sand.u32 %s58, 1
        %s247 = smul.addr %s246, 8
        %s248 = scalar_lea.vmem [#allocation2], %s247
        %p249 = pneg %p71
        %p250 = pneg %p68
        %s251 = sand.u32 %s88, 1
        %s252 = scalar_lea.sflag [#allocation6], %s251
        %s253 = sand.u32 %s88, 1
        %s254 = smul.addr %s253, 2
        %s255 = scalar_lea.vmem [#allocation5], %s254
        %p256 = pneg %p101
        %p257 = pneg %p98
        %p258 = pneg %p129
        %p259 = pneg %p126
        %s260 = sand.u32 %s116, 1
        %s261 = scalar_lea.sflag [#allocation4], %s260
        %s262 = sand.u32 %s116, 1
        %s263 = smul.addr %s262, 2
        %s264 = scalar_lea.vmem [#allocation7], %s263
        %p265 = pneg %p157
        %p266 = pneg %p154
        %s267 = sand.u32 %s144, 1
        %s268 = scalar_lea.sflag [#allocation9], %s267
        %s269 = sand.u32 %s144, 1
        %s270 = smul.addr %s269, 2
        %s271 = scalar_lea.vmem [#allocation8], %s270
        %s272 = sadd.s32 %s33, %s34
        %s273 = sadd.s32 %s33, %s34
        %p274 = scmp.eq.s32.totalorder %s34, 0
        // Predicated region
        $region37: #{tpu_custom_call.1} parent=27 // pred_check
          %p275 = pneg %p274
        $region38: #{tpu_custom_call.1} parent=27 // pred_check_branch
          %277 = sbr.rel (%p275) target = $region40
        $region39: #{tpu_custom_call.1} parent=27 // pred_region
          %278 = vst [vmem:[%s264] sm:$0x3] 0.0
          %279 = vst [vmem:[%s271] sm:$0x3] 0.0
        $region40: #{tpu_custom_call.1} parent=27 // pred_fallthru
          _
        %v280 = vld [vmem:[%s230] sm:$0x3]
        %v281 = vld [vmem:[%s230 + $0x2] sm:$0x3]
        %v282 = vld [vmem:[%s230 + $0x4] sm:$0x3]
        %v283 = vld [vmem:[%s230 + $0x6] sm:$0x3]
        %v284 = vld [vmem:[%s239] sm:$0x3]
        %vm285 = vcmask 1041408
        %v286 = vsel %vm285, %v280, -inf
        %v287 = vsel %vm285, %v281, -inf
        %v288 = vsel %vm285, %v282, -inf
        %v289 = vsel %vm285, %v283, -inf
        %v290 = vmax.f32 %v286, %v287
        %v291 = vmax.f32 %v288, %v289
        %v292 = vmax.f32 %v290, %v291
        %v293 = vsub.f32 %v280, %v292
        %v294 = vsub.f32 %v281, %v292
        %v295 = vsub.f32 %v282, %v292
        %v296 = vsub.f32 %v283, %v292
        %v297 = vmul.f32 %v293, 1.442695
        %v298 = vpow.pop %v297
        %v299 = vmul.f32 %v294, 1.442695
        %v300 = vpow.pop %v299
        %v301 = vmul.f32 %v295, 1.442695
        %v302 = vpow.pop %v301
        %v303 = vmul.f32 %v296, 1.442695
        %v304 = vpow.pop %v303
        %v305 = vsel %vm285, %v298, 0.0
        %v306 = vsel %vm285, %v300, 0.0
        %v307 = vadd.f32 %v305, %v306
        %v308 = vsel %vm285, %v302, 0.0
        %v309 = vadd.f32 %v307, %v308
        %v310 = vsel %vm285, %v304, 0.0
        %v311 = vadd.f32 %v309, %v310
        %v312 = vlog2.pop %v311
        %v313 = vmul.f32 %v312, 0.6931472
        %vm314 = vcmp.eq.s32.totalorder %v284, 0
        %vm315 = vcmp.eq.s32.totalorder %v284, 1
        %vm316 = vcmp.eq.s32.totalorder %v284, 2
        %vm317 = vcmp.eq.s32.totalorder %v284, 3
        %v318 = vsel %vm314, %v280, 0.0
        %v319 = vsel %vm315, %v281, 0.0
        %v320 = vsel %vm316, %v282, 0.0
        %v321 = vsel %vm317, %v283, 0.0
        %v322 = vsel %vm285, %v318, 0.0
        %v323 = vsel %vm285, %v319, 0.0
        %v324 = vadd.f32 %v322, %v323
        %v325 = vsel %vm285, %v320, 0.0
        %v326 = vadd.f32 %v324, %v325
        %v327 = vsel %vm285, %v321, 0.0
        %v328 = vadd.f32 %v326, %v327
        %vm329 = vcmp.ne.s32.totalorder %v284, 4294967295
        %v330 = vadd.f32 %v292, %v313
        %v331 = vsub.f32 %v330, %v328
        %v332 = vld [vmem:[%s264] sm:$0x3]
        %v333 = vsel %vm329, %v331, 0.0
        %v334 = vadd.f32 %v332, %v333
        %335 = vst [vmem:[%s264] sm:$0x3] %v334
        %v336 = vld [vmem:[%s271] sm:$0x3]
        %v337 = vsel %vm329, 1, 0
        %v338 = vcvt.s32.f32 %v337
        %v339 = vadd.f32 %v336, %v338
        %340 = vst [vmem:[%s271] sm:$0x3] %v339
        %s341 = sand.u32 %s116, 1
        %s342 = scalar_lea.sflag [#allocation4], %s341
        %s343 = sand.u32 %s116, 1
        %s344 = smul.addr %s343, 2
        %s345 = scalar_lea.vmem [#allocation7], %s344
        %s346 = sand.u32 %s144, 1
        %s347 = scalar_lea.sflag [#allocation9], %s346
        %s348 = sand.u32 %s144, 1
        %s349 = smul.addr %s348, 2
        %s350 = scalar_lea.vmem [#allocation8], %s349
        // Predicated region
        $region41: #{tpu_custom_call.1} parent=27 // pred_check
          %p351 = pneg %p126
        $region42: #{tpu_custom_call.1} parent=27 // pred_check_branch
          %353 = sbr.rel (%p351) target = $region44
        $region43: #{tpu_custom_call.1} parent=27 // pred_region
          %s355 = ssub.s32 32, 32
          %356 = vsyncadd %s342, %s355
          %s357 = sadd.s32 %s33, %s32
          %s358 = smul.addr %s357, 32
          %s359 = scalar_lea.hbm %s2, %s358
          %s361 = sshll.u32 %s345, 4
          %s362 = int_to_ptr.vmem [resolvable:$true] %s361
          %364 = dma.vmem_to_hbm [thread:$0]  %s362, 32, %s359, %s342
        $region44: #{tpu_custom_call.1} parent=27 // pred_fallthru
          _
        // Predicated region
        $region45: #{tpu_custom_call.1} parent=27 // pred_check
          %p365 = pneg %p154
        $region46: #{tpu_custom_call.1} parent=27 // pred_check_branch
          %367 = sbr.rel (%p365) target = $region48
        $region47: #{tpu_custom_call.1} parent=27 // pred_region
          %s369 = ssub.s32 32, 32
          %370 = vsyncadd %s347, %s369
          %s371 = sadd.s32 %s33, %s32
          %s372 = smul.addr %s371, 32
          %s373 = scalar_lea.hbm %s3, %s372
          %s375 = sshll.u32 %s350, 4
          %s376 = int_to_ptr.vmem [resolvable:$true] %s375
          %378 = dma.vmem_to_hbm [thread:$0]  %s376, 32, %s373, %s347
        $region48: #{tpu_custom_call.1} parent=27 // pred_fallthru
          _
      $region28: #{tpu_custom_call.1} parent=5 // pred_fallthru
        _
      %p379 = scmp.le.s32.totalorder 2, %s22
      // Predicated region
      $region49: #{tpu_custom_call.1} parent=5 // pred_check
        %p380 = pneg %p379
      $region50: #{tpu_custom_call.1} parent=5 // pred_check_branch
        %382 = sbr.rel (%p380) target = $region52
      $region51: #{tpu_custom_call.1} parent=5 // pred_region
        %s383 = ssub.s32 %s22, 2
        // Predicated region
        $region53: #{tpu_custom_call.1} parent=51 // pred_check
          %p384 = pneg %p132
        $region54: #{tpu_custom_call.1} parent=51 // pred_check_branch
          %386 = sbr.rel (%p384) target = $region56
        $region55: #{tpu_custom_call.1} parent=51 // pred_region
          %s387 = sand.u32 %s117, 1
          %s388 = scalar_lea.sflag [#allocation4], %s387
          %s389 = sand.u32 %s117, 1
          %s390 = smul.addr %s389, 2
          %s391 = scalar_lea.vmem [#allocation7], %s390
          %392 = dma.done %s388, 32
        $region56: #{tpu_custom_call.1} parent=51 // pred_fallthru
          _
        // Predicated region
        $region57: #{tpu_custom_call.1} parent=51 // pred_check
          %p393 = pneg %p160
        $region58: #{tpu_custom_call.1} parent=51 // pred_check_branch
          %395 = sbr.rel (%p393) target = $region60
        $region59: #{tpu_custom_call.1} parent=51 // pred_region
          %s396 = sand.u32 %s145, 1
          %s397 = scalar_lea.sflag [#allocation9], %s396
          %s398 = sand.u32 %s145, 1
          %s399 = smul.addr %s398, 2
          %s400 = scalar_lea.vmem [#allocation8], %s399
          %401 = dma.done %s397, 32
        $region60: #{tpu_custom_call.1} parent=51 // pred_fallthru
          _
      $region52: #{tpu_custom_call.1} parent=5 // pred_fallthru
        _
    $region6: #{tpu_custom_call.1} parent=1 // loop_footer
      %s26 = sadd.s32 1, %s22
    $region7: #{tpu_custom_call.1} parent=1 // loop_footer_branch
      %21 = sbr.rel target = $region3
    $region8: #{tpu_custom_call.1} parent=1 // loop_exit
      _
    %402 = vsyncpa [#allocation3], 1
    %s403 = scalar_lea.sflag [#allocation3], 1
    %404 = vsyncpa %s403, 1
    %405 = vsyncpa [#allocation6], 1
    %s406 = scalar_lea.sflag [#allocation6], 1
    %407 = vsyncpa %s406, 1
    %408 = vsyncpa [#allocation4], 1
    %s409 = scalar_lea.sflag [#allocation4], 1
    %410 = vsyncpa %s409, 1
    %411 = vsyncpa [#allocation9], 1
    %s412 = scalar_lea.sflag [#allocation9], 1
    %413 = vsyncpa %s412, 1

</llo_original>
